<compile_context>
chip_gen: v7x
topology: tpu7x:2x2x1
jax: 0.10.0
libtpu: 0.0.40
codegen_flags: <defaults>
</compile_context>

<pallas_src>
import functools

import jax
import jax.numpy as jnp
import numpy as np
from jax.experimental import pallas as pl
from jax.experimental.pallas import tpu as pltpu


def _round_up(n, m):
    return ((n + m - 1) // m) * m


# ---------------------------------------------------------------------------
# Kernel: y = relu(x @ w2 + b2) @ wc2  +  x @ W_lin  +  b_out
#   wx_ref = [ w2 | W_lin ]  (D_pad, H_pad + O_pad)   -> single fused matmul
#   c_ref  row 0 = b2 (width H_pad), row 1 = b_out (width O_pad)
# ---------------------------------------------------------------------------
def _fused_kernel(x_ref, wx_ref, wc2_ref, c_ref, o_ref, *, h_pad):
    x = x_ref[...]                                            # (B_pad, D_pad)

    # one fused MXU matmul for both the ReLU branch and the folded linear path
    z = jnp.dot(x, wx_ref[...], preferred_element_type=jnp.float32)

    o_pad = o_ref.shape[-1]
    h2 = jnp.maximum(z[:, :h_pad] + c_ref[0:1, :h_pad], 0.0)  # (B_pad, H_pad)

    y = z[:, h_pad:] + jnp.dot(h2, wc2_ref[...],
                               preferred_element_type=jnp.float32)
    o_ref[...] = y + c_ref[1:2, :o_pad]


# ---------------------------------------------------------------------------
# Host-side algebraic folding + lane/sublane padding.
# ---------------------------------------------------------------------------
def pack_params(p, D, H, O):
    D_pad = _round_up(D, 128)
    H_pad = _round_up(H, 128)
    O_pad = _round_up(O, 128)

    # out1 path folded: x @ w1 @ wc1  ==  x @ W1C
    w1c = p["w1"] @ p["wc1"]                                   # (D, O)

    # conv(k=3, pad=1) + mean over length is linear in x:
    #   out3 @ wc3 = (s0*U0 + S*U1 + s2*U2)   with  U = (w3 @ wc3) / D,
    #   S = row-sum(x), s0 = S - x[:, D-1], s2 = S - x[:, 0]
    # => equivalent to x @ M3 with the row pattern below.
    u = (p["w3"] @ p["wc3"]) / D                               # (3, O)
    m3 = jnp.tile(u[0] + u[1] + u[2], (D, 1))                  # (D, O)
    m3 = m3.at[0].add(-u[2])
    m3 = m3.at[D - 1].add(-u[0])

    w_lin = w1c + m3                                           # (D, O)
    b_out = p["bc"] + p["b1"] @ p["wc1"] + p["b3"] @ p["wc3"]  # (1, O)

    wx = jnp.zeros((D_pad, H_pad + O_pad), jnp.float32)
    wx = wx.at[:D, :H].set(p["w2"])
    wx = wx.at[:D, H_pad:H_pad + O].set(w_lin)

    wc2 = jnp.zeros((H_pad, O_pad), jnp.float32).at[:H, :O].set(p["wc2"])

    pmax = max(H_pad, O_pad)
    consts = jnp.zeros((8, pmax), jnp.float32)
    consts = consts.at[0, :H].set(p["b2"][0])
    consts = consts.at[1, :O].set(b_out[0])

    return dict(wx=wx, wc2=wc2, consts=consts,
                D_pad=D_pad, H_pad=H_pad, O_pad=O_pad)


def three_operation_model(x, params):
    """x: (B, D) float32. params: dict from init_params."""
    B, D = x.shape
    H = params["w2"].shape[1]
    O = params["bc"].shape[1]

    packed = pack_params(params, D, H, O)
    D_pad, H_pad, O_pad = packed["D_pad"], packed["H_pad"], packed["O_pad"]
    B_pad = _round_up(B, 8)

    x_pad = jnp.zeros((B_pad, D_pad), jnp.float32).at[:B, :D].set(x)

    args = (x_pad, packed["wx"], packed["wc2"], packed["consts"])
    in_specs = [pl.BlockSpec(a.shape, lambda i, n=a.ndim: (0,) * n)
                for a in args]
    out_spec = pl.BlockSpec((B_pad, O_pad), lambda i: (0, 0))

    kernel = functools.partial(_fused_kernel, h_pad=H_pad)

    y = pl.pallas_call(
        kernel,
        out_shape=jax.ShapeDtypeStruct((B_pad, O_pad), jnp.float32),
        grid=(1,),
        in_specs=in_specs,
        out_specs=out_spec,
        compiler_params=pltpu.CompilerParams(
            dimension_semantics=("arbitrary",)),
    )(*args)

    return y[:B, :O]


# ---------------------------------------------------------------------------
# Parameter init (PyTorch-default-like uniform), stored pre-transposed.
# ---------------------------------------------------------------------------
def init_params(key, input_dim, hidden_dim, output_dim):
    ks = jax.random.split(key, 8)

    def unif(k, shape, fan_in):
        bound = 1.0 / np.sqrt(fan_in)
        return jax.random.uniform(k, shape, jnp.float32, -bound, bound)

    # Linear op1 / op2 : PyTorch weight (H, D) -> stored as (D, H)
    w1 = unif(ks[0], (input_dim, hidden_dim), input_dim)
    b1 = unif(ks[1], (1, hidden_dim), input_dim)
    w2 = unif(ks[2], (input_dim, hidden_dim), input_dim)
    b2 = unif(ks[3], (1, hidden_dim), input_dim)
    # Conv1d op3 : PyTorch weight (H, 1, 3) -> stored as (3, H)
    w3 = unif(ks[4], (3, hidden_dim), 3)
    b3 = unif(ks[5], (1, hidden_dim), 3)
    # combination : PyTorch weight (O, 3H) -> stored as three (H, O) slices
    wc = unif(ks[6], (3 * hidden_dim, output_dim), 3 * hidden_dim)
    bc = unif(ks[7], (1, output_dim), 3 * hidden_dim)
    return dict(w1=w1, b1=b1, w2=w2, b2=b2, w3=w3, b3=b3,
                wc1=wc[0 * hidden_dim:1 * hidden_dim],
                wc2=wc[1 * hidden_dim:2 * hidden_dim],
                wc3=wc[2 * hidden_dim:3 * hidden_dim],
                bc=bc)


def reference(x, p):
    """Pure-JAX reference mirroring the PyTorch forward exactly."""
    out1 = x @ p["w1"] + p["b1"]
    out2 = jax.nn.relu(x @ p["w2"] + p["b2"])
    # explicit conv1d(k=3, pad=1) + mean over length
    xpad = jnp.pad(x, ((0, 0), (1, 1)))
    conv = (xpad[:, None, 0:-2] * p["w3"][0][None, :, None]
            + xpad[:, None, 1:-1] * p["w3"][1][None, :, None]
            + xpad[:, None, 2:] * p["w3"][2][None, :, None])   # (B, H, D)
    out3 = conv.mean(axis=2) + p["b3"]
    cat = jnp.concatenate([out1, out2, out3], axis=-1)
    wc = jnp.concatenate([p["wc1"], p["wc2"], p["wc3"]], axis=0)
    return cat @ wc + p["bc"]


if __name__ == "__main__":
    B, D, H, O = 4, 16, 32, 8
    key = jax.random.PRNGKey(0)
    kx, kp = jax.random.split(key)
    x = jax.random.normal(kx, (B, D), jnp.float32)
    params = init_params(kp, D, H, O)

    y = three_operation_model(x, params)
    jax.block_until_ready(y)

    y_ref = reference(x, params)
    np.testing.assert_allclose(np.asarray(y), np.asarray(y_ref),
                               rtol=1e-5, atol=1e-5)
    print("KERNEL_OK")
</pallas_src>

<mosaic_0001>
module attributes {stable_mosaic.version = 11 : i64} {
  func.func @_fused_kernel(%arg0: i32, %arg1: memref<8x128xf32, #tpu.memory_space<vmem>>, %arg2: memref<128x256xf32, #tpu.memory_space<vmem>>, %arg3: memref<128x128xf32, #tpu.memory_space<vmem>>, %arg4: memref<8x128xf32, #tpu.memory_space<vmem>>, %arg5: memref<8x128xf32, #tpu.memory_space<vmem>>) attributes {dimension_semantics = [#tpu.dimension_semantics<arbitrary>], iteration_bounds = array<i64: 1>, scalar_prefetch = 0 : i64, scratch_operands = 0 : i64, tpu.core_type = #tpu.core_type<tc>, window_params = [{pipeline_mode = #tpu.pipeline_mode<synchronous>, transform_indices = @transform_0, window_bounds = array<i64: 8, 128>}, {pipeline_mode = #tpu.pipeline_mode<synchronous>, transform_indices = @transform_1, window_bounds = array<i64: 128, 256>}, {pipeline_mode = #tpu.pipeline_mode<synchronous>, transform_indices = @transform_2, window_bounds = array<i64: 128, 128>}, {pipeline_mode = #tpu.pipeline_mode<synchronous>, transform_indices = @transform_3, window_bounds = array<i64: 8, 128>}, {pipeline_mode = #tpu.pipeline_mode<synchronous>, transform_indices = @transform_4, window_bounds = array<i64: 8, 128>}]} {
    %c0 = arith.constant 0 : index
    %c0_0 = arith.constant 0 : index
    %0 = vector.load %arg1[%c0, %c0_0] : memref<8x128xf32, #tpu.memory_space<vmem>>, vector<8x128xf32>
    %c0_1 = arith.constant 0 : index
    %c0_2 = arith.constant 0 : index
    %1 = vector.load %arg2[%c0_1, %c0_2] : memref<128x256xf32, #tpu.memory_space<vmem>>, vector<128x256xf32>
    %cst = arith.constant dense<0.000000e+00> : vector<8x256xf32>
    %2 = tpu.matmul %0, %1, %cst {dimension_numbers = #tpu.dot_dimension_numbers<[1], [0], [0], [1], [0, 0, 1, 1], [], []>} : vector<8x128xf32>, vector<128x256xf32>, vector<8x256xf32> -> vector<8x256xf32>
    %3 = vector.extract_strided_slice %2 {offsets = [0, 0], sizes = [8, 128], strides = [1, 1]} : vector<8x256xf32> to vector<8x128xf32>
    %c0_3 = arith.constant 0 : index
    %c0_4 = arith.constant 0 : index
    %4 = vector.load %arg4[%c0_3, %c0_4] : memref<8x128xf32, #tpu.memory_space<vmem>>, vector<1x128xf32>
    %5 = vector.broadcast %4 : vector<1x128xf32> to vector<8x128xf32>
    %6 = arith.addf %3, %5 : vector<8x128xf32>
    %cst_5 = arith.constant 0.000000e+00 : f32
    %7 = vector.broadcast %cst_5 : f32 to vector<8x128xf32>
    %8 = arith.maximumf %6, %7 : vector<8x128xf32>
    %9 = vector.extract_strided_slice %2 {offsets = [0, 128], sizes = [8, 128], strides = [1, 1]} : vector<8x256xf32> to vector<8x128xf32>
    %c0_6 = arith.constant 0 : index
    %c0_7 = arith.constant 0 : index
    %10 = vector.load %arg3[%c0_6, %c0_7] : memref<128x128xf32, #tpu.memory_space<vmem>>, vector<128x128xf32>
    %cst_8 = arith.constant dense<0.000000e+00> : vector<8x128xf32>
    %11 = tpu.matmul %8, %10, %cst_8 {dimension_numbers = #tpu.dot_dimension_numbers<[1], [0], [0], [1], [0, 0, 1, 1], [], []>} : vector<8x128xf32>, vector<128x128xf32>, vector<8x128xf32> -> vector<8x128xf32>
    %12 = arith.addf %9, %11 : vector<8x128xf32>
    %c1 = arith.constant 1 : index
    %c0_9 = arith.constant 0 : index
    %13 = vector.load %arg4[%c1, %c0_9] : memref<8x128xf32, #tpu.memory_space<vmem>>, vector<1x128xf32>
    %14 = vector.broadcast %13 : vector<1x128xf32> to vector<8x128xf32>
    %15 = arith.addf %12, %14 : vector<8x128xf32>
    %c0_10 = arith.constant 0 : index
    %c0_11 = arith.constant 0 : index
    %16 = vector.load %arg5[%c0_10, %c0_11] : memref<8x128xf32, #tpu.memory_space<vmem>>, vector<8x128xf32>
    tpu.vector_store %arg5[%c0_10, %c0_11], %15 {strides = array<i32>} : memref<8x128xf32, #tpu.memory_space<vmem>>, vector<8x128xf32>,
    return
  }
  func.func @transform_0(%arg0: i32) -> (i32, i32) {
    %c0_i32 = arith.constant 0 : i32
    %c0_i32_0 = arith.constant 0 : i32
    %c0_i32_1 = arith.constant 0 : i32
    return %c0_i32, %c0_i32_0 : i32, i32
  }
  func.func @transform_1(%arg0: i32) -> (i32, i32) {
    %c0_i32 = arith.constant 0 : i32
    %c0_i32_0 = arith.constant 0 : i32
    %c0_i32_1 = arith.constant 0 : i32
    return %c0_i32, %c0_i32_0 : i32, i32
  }
  func.func @transform_2(%arg0: i32) -> (i32, i32) {
    %c0_i32 = arith.constant 0 : i32
    %c0_i32_0 = arith.constant 0 : i32
    %c0_i32_1 = arith.constant 0 : i32
    return %c0_i32, %c0_i32_0 : i32, i32
  }
  func.func @transform_3(%arg0: i32) -> (i32, i32) {
    %c0_i32 = arith.constant 0 : i32
    %c0_i32_0 = arith.constant 0 : i32
    %c0_i32_1 = arith.constant 0 : i32
    return %c0_i32, %c0_i32_0 : i32, i32
  }
  func.func @transform_4(%arg0: i32) -> (i32, i32) {
    %c0_i32 = arith.constant 0 : i32
    %c0_i32_0 = arith.constant 0 : i32
    %c0_i32_1 = arith.constant 0 : i32
    return %c0_i32, %c0_i32_0 : i32, i32
  }
}

</mosaic_0001>

<llo_original>
// kernel: tpu_custom_call.1
$region0: #{tpu_custom_call.1}
  #allocation0 [shape = 'u32[]', space=smem, size = 0x4, offset = 0x4, fixed_abs, tag = 'smem constant byte address 0x4 - core index']
  #allocation1 [shape = 'u32[144,128]{1,0:T(1,128)}', space=vmem, size = 0x12000, scoped, tag = 'internal scratch']
  %s0 = inlined_call_operand.hbm [shape: f32[8,128], index: 0, kind: input, shape index: {}]
  %s1 = inlined_call_operand.hbm [shape: f32[128,256], index: 1, kind: input, shape index: {}]
  %s2 = inlined_call_operand.hbm [shape: f32[128,128], index: 2, kind: input, shape index: {}]
  %s3 = inlined_call_operand.vmem [shape: f32[8,128], index: 3, kind: input, shape index: {}]
  %s4 = inlined_call_operand.hbm [shape: f32[8,128], index: 4, kind: output, shape index: {}]
  %s5 = sld [smem:[#allocation0]]
  $region38: #{tpu_custom_call.1} parent=0
    _
  %s7 = ssub.s32 1, %s5
  %s8 = scalar_select 0, %s7, %s5
  $region1: #{tpu_custom_call.1} parent=0
    #allocation2 [shape = 'u8[4096]{0}', space=vmem, size = 0x1000, scoped, tag = 'input window, operand 0, single buffered']
    #allocation3 [shape = 's32[1]{0}', space=sflag, size = 0x4, scoped, tag = 'scoped memory for tpu_custom_call.1']
    #allocation4 [shape = 's32[1]{0}', space=sflag, size = 0x4, scoped, tag = 'scoped memory for tpu_custom_call.1']
    #allocation5 [shape = 'u8[131072]{0}', space=vmem, size = 0x20000, scoped, tag = 'input window, operand 1, single buffered']
    #allocation6 [shape = 's32[1]{0}', space=sflag, size = 0x4, scoped, tag = 'scoped memory for tpu_custom_call.1']
    #allocation7 [shape = 'u8[65536]{0}', space=vmem, size = 0x10000, scoped, tag = 'input window, operand 2, single buffered']
    #allocation8 [shape = 'u8[4096]{0}', space=vmem, size = 0x1000, scoped, tag = 'output window, operand 0, single buffered']
    %9 = vsyncpa [#allocation3], 0
    %10 = vsyncpa [#allocation6], 0
    %11 = vsyncpa [#allocation4], 0
    // Predicated region
    $region2: #{tpu_custom_call.1} parent=1 // pred_check
      _
    $region3: #{tpu_custom_call.1} parent=1 // pred_check_branch
      %13 = sbr.rel (0) target = $region5
    $region4: #{tpu_custom_call.1} parent=1 // pred_region
      %s15 = ssub.s32 128, 128
      %16 = vsyncadd [#allocation3], %s15
      %s18 = sshll.u32 [#allocation2], 4
      %s19 = int_to_ptr.vmem [resolvable:$true] %s18
      %21 = dma.hbm_to_vmem [thread:$0]  %s0, 128, %s19, [#allocation3]
    $region5: #{tpu_custom_call.1} parent=1 // pred_fallthru
      _
    // Predicated region
    $region6: #{tpu_custom_call.1} parent=1 // pred_check
      _
    $region7: #{tpu_custom_call.1} parent=1 // pred_check_branch
      %23 = sbr.rel (0) target = $region9
    $region8: #{tpu_custom_call.1} parent=1 // pred_region
      %s25 = ssub.s32 4096, 4096
      %26 = vsyncadd [#allocation6], %s25
      %s27 = sshll.u32 [#allocation5], 4
      %s28 = int_to_ptr.vmem [resolvable:$true] %s27
      %33 = dma.hbm_to_vmem [thread:$0]  %s1, 4096, %s28, [#allocation6], 256, 256, 16
    $region9: #{tpu_custom_call.1} parent=1 // pred_fallthru
      _
    // Predicated region
    $region10: #{tpu_custom_call.1} parent=1 // pred_check
      _
    $region11: #{tpu_custom_call.1} parent=1 // pred_check_branch
      %35 = sbr.rel (0) target = $region13
    $region12: #{tpu_custom_call.1} parent=1 // pred_region
      %s37 = ssub.s32 2048, 2048
      %38 = vsyncadd [#allocation6], %s37
      %s39 = sshll.u32 [#allocation7], 4
      %s40 = int_to_ptr.vmem [resolvable:$true] %s39
      %45 = dma.hbm_to_vmem [thread:$0]  %s2, 2048, %s40, [#allocation6], 128, 128, 8
    $region13: #{tpu_custom_call.1} parent=1 // pred_fallthru
      _
    // Predicated region
    $region14: #{tpu_custom_call.1} parent=1 // pred_check
      _
    $region15: #{tpu_custom_call.1} parent=1 // pred_check_branch
      %47 = sbr.rel (0) target = $region17
    $region16: #{tpu_custom_call.1} parent=1 // pred_region
      _
    $region17: #{tpu_custom_call.1} parent=1 // pred_fallthru
      _
    // Predicated region
    $region18: #{tpu_custom_call.1} parent=1 // pred_check
      _
    $region19: #{tpu_custom_call.1} parent=1 // pred_check_branch
      %49 = sbr.rel (0) target = $region21
    $region20: #{tpu_custom_call.1} parent=1 // pred_region
      %50 = dma.done [#allocation3], 128
    $region21: #{tpu_custom_call.1} parent=1 // pred_fallthru
      _
    // Predicated region
    $region22: #{tpu_custom_call.1} parent=1 // pred_check
      _
    $region23: #{tpu_custom_call.1} parent=1 // pred_check_branch
      %52 = sbr.rel (0) target = $region25
    $region24: #{tpu_custom_call.1} parent=1 // pred_region
      %53 = dma.done [#allocation6], 4096
    $region25: #{tpu_custom_call.1} parent=1 // pred_fallthru
      _
    // Predicated region
    $region26: #{tpu_custom_call.1} parent=1 // pred_check
      _
    $region27: #{tpu_custom_call.1} parent=1 // pred_check_branch
      %55 = sbr.rel (0) target = $region29
    $region28: #{tpu_custom_call.1} parent=1 // pred_region
      %56 = dma.done [#allocation6], 2048
    $region29: #{tpu_custom_call.1} parent=1 // pred_fallthru
      _
    %v57 = vld [vmem:[#allocation2] sm:$0xff]
    %v58 = vld [vmem:[#allocation5] sm:$0xff]
    %v59 = vld [vmem:[#allocation5 + $0x8] sm:$0xff]
    %v60 = vld [vmem:[#allocation5 + $0x10] sm:$0xff]
    %v61 = vld [vmem:[#allocation5 + $0x18] sm:$0xff]
    %v62 = vld [vmem:[#allocation5 + $0x20] sm:$0xff]
    %v63 = vld [vmem:[#allocation5 + $0x28] sm:$0xff]
    %v64 = vld [vmem:[#allocation5 + $0x30] sm:$0xff]
    %v65 = vld [vmem:[#allocation5 + $0x38] sm:$0xff]
    %v66 = vld [vmem:[#allocation5 + $0x40] sm:$0xff]
    %v67 = vld [vmem:[#allocation5 + $0x48] sm:$0xff]
    %v68 = vld [vmem:[#allocation5 + $0x50] sm:$0xff]
    %v69 = vld [vmem:[#allocation5 + $0x58] sm:$0xff]
    %v70 = vld [vmem:[#allocation5 + $0x60] sm:$0xff]
    %v71 = vld [vmem:[#allocation5 + $0x68] sm:$0xff]
    %v72 = vld [vmem:[#allocation5 + $0x70] sm:$0xff]
    %v73 = vld [vmem:[#allocation5 + $0x78] sm:$0xff]
    %v74 = vld [vmem:[#allocation5 + $0x80] sm:$0xff]
    %v75 = vld [vmem:[#allocation5 + $0x88] sm:$0xff]
    %v76 = vld [vmem:[#allocation5 + $0x90] sm:$0xff]
    %v77 = vld [vmem:[#allocation5 + $0x98] sm:$0xff]
    %v78 = vld [vmem:[#allocation5 + $0xa0] sm:$0xff]
    %v79 = vld [vmem:[#allocation5 + $0xa8] sm:$0xff]
    %v80 = vld [vmem:[#allocation5 + $0xb0] sm:$0xff]
    %v81 = vld [vmem:[#allocation5 + $0xb8] sm:$0xff]
    %v82 = vld [vmem:[#allocation5 + $0xc0] sm:$0xff]
    %v83 = vld [vmem:[#allocation5 + $0xc8] sm:$0xff]
    %v84 = vld [vmem:[#allocation5 + $0xd0] sm:$0xff]
    %v85 = vld [vmem:[#allocation5 + $0xd8] sm:$0xff]
    %v86 = vld [vmem:[#allocation5 + $0xe0] sm:$0xff]
    %v87 = vld [vmem:[#allocation5 + $0xe8] sm:$0xff]
    %v88 = vld [vmem:[#allocation5 + $0xf0] sm:$0xff]
    %v89 = vld [vmem:[#allocation5 + $0xf8] sm:$0xff]
    %90 = vmatprep.subr.mxu0 %v59
    %91 = vmatpush1.msra.mxu0 %v58
    %92 = vmatprep.subr.mxu0 %v61
    %93 = vmatpush1.msra.mxu0 %v60
    %94 = vmatprep.subr.mxu0 %v63
    %95 = vmatpush1.msra.mxu0 %v62
    %96 = vmatprep.subr.mxu0 %v65
    %97 = vmatpush1.msra.mxu0 %v64
    %98 = vmatprep.subr.mxu0 %v67
    %99 = vmatpush1.msra.mxu0 %v66
    %100 = vmatprep.subr.mxu0 %v69
    %101 = vmatpush1.msra.mxu0 %v68
    %102 = vmatprep.subr.mxu0 %v71
    %103 = vmatpush1.msra.mxu0 %v70
    %104 = vmatprep.subr.mxu0 %v73
    %105 = vmatpush1.msra.mxu0 %v72
    %106 = vmatprep.subr.mxu0 %v75
    %107 = vmatpush1.msra.mxu0 %v74
    %108 = vmatprep.subr.mxu0 %v77
    %109 = vmatpush1.msra.mxu0 %v76
    %110 = vmatprep.subr.mxu0 %v79
    %111 = vmatpush1.msra.mxu0 %v78
    %112 = vmatprep.subr.mxu0 %v81
    %113 = vmatpush1.msra.mxu0 %v80
    %114 = vmatprep.subr.mxu0 %v83
    %115 = vmatpush1.msra.mxu0 %v82
    %116 = vmatprep.subr.mxu0 %v85
    %117 = vmatpush1.msra.mxu0 %v84
    %118 = vmatprep.subr.mxu0 %v87
    %119 = vmatpush1.msra.mxu0 %v86
    %120 = vmatprep.subr.mxu0 %v89
    %121 = vmatpush1.msra.mxu0 %v88
    %122 = vmatprep.subr.mxu0 0.0
    %123 = vmatpush1.msra.mxu0 0.0
    %124 = vmatprep.subr.mxu0 0.0
    %125 = vmatpush1.msra.mxu0 0.0
    %126 = vmatprep.subr.mxu0 0.0
    %127 = vmatpush1.msra.mxu0 0.0
    %128 = vmatprep.subr.mxu0 0.0
    %129 = vmatpush1.msra.mxu0 0.0
    %130 = vmatprep.subr.mxu0 0.0
    %131 = vmatpush1.msra.mxu0 0.0
    %132 = vmatprep.subr.mxu0 0.0
    %133 = vmatpush1.msra.mxu0 0.0
    %134 = vmatprep.subr.mxu0 0.0
    %135 = vmatpush1.msra.mxu0 0.0
    %136 = vmatprep.subr.mxu0 0.0
    %137 = vmatpush1.msra.mxu0 0.0
    %138 = vmatprep.subr.mxu0 0.0
    %139 = vmatpush1.msra.mxu0 0.0
    %140 = vmatprep.subr.mxu0 0.0
    %141 = vmatpush1.msra.mxu0 0.0
    %142 = vmatprep.subr.mxu0 0.0
    %143 = vmatpush1.msra.mxu0 0.0
    %144 = vmatprep.subr.mxu0 0.0
    %145 = vmatpush1.msra.mxu0 0.0
    %146 = vmatprep.subr.mxu0 0.0
    %147 = vmatpush1.msra.mxu0 0.0
    %148 = vmatprep.subr.mxu0 0.0
    %149 = vmatpush1.msra.mxu0 0.0
    %150 = vmatprep.subr.mxu0 0.0
    %151 = vmatpush1.msra.mxu0 0.0
    %152 = vmatprep.subr.mxu0 0.0
    %153 = vmatpush1.msra.mxu0 0.0
    %154 = vmatprep.mubr.f32.mxu0 0.0
    %155 = vmatmul.mubr.f32.gmra.mrb[0].mxu0 %v57
    %v156 = vpop.f32.mrb[0].mxu0
    %v157 = vadd.f32 0.0, %v156
    %v158 = vpop.f32.mrb[0].mxu0
    %v159 = vadd.f32 0.0, %v158
    %160 = vdwg.mxu0
    %v161 = vld [vmem:[%s3] sm:$0x1]
    %v162 = vlaneseq
    %v163 = vshrl.u32 %v162, 7
    %v164 = vsub.s32 0, %v163
    %v165 = vrot.slane %v161, %v164
    %v166 = vadd.f32 %v157, %v165
    %v167 = vmax.f32 %v166, 0.0
    %v168 = vld [vmem:[#allocation7] sm:$0xff]
    %v169 = vld [vmem:[#allocation7 + $0x8] sm:$0xff]
    %v170 = vld [vmem:[#allocation7 + $0x10] sm:$0xff]
    %v171 = vld [vmem:[#allocation7 + $0x18] sm:$0xff]
    %v172 = vld [vmem:[#allocation7 + $0x20] sm:$0xff]
    %v173 = vld [vmem:[#allocation7 + $0x28] sm:$0xff]
    %v174 = vld [vmem:[#allocation7 + $0x30] sm:$0xff]
    %v175 = vld [vmem:[#allocation7 + $0x38] sm:$0xff]
    %v176 = vld [vmem:[#allocation7 + $0x40] sm:$0xff]
    %v177 = vld [vmem:[#allocation7 + $0x48] sm:$0xff]
    %v178 = vld [vmem:[#allocation7 + $0x50] sm:$0xff]
    %v179 = vld [vmem:[#allocation7 + $0x58] sm:$0xff]
    %v180 = vld [vmem:[#allocation7 + $0x60] sm:$0xff]
    %v181 = vld [vmem:[#allocation7 + $0x68] sm:$0xff]
    %v182 = vld [vmem:[#allocation7 + $0x70] sm:$0xff]
    %v183 = vld [vmem:[#allocation7 + $0x78] sm:$0xff]
    %184 = vmatprep.subr.mxu0 0.0
    %185 = vmatpush1.msra.mxu0 %v168
    %186 = vmatprep.subr.mxu0 0.0
    %187 = vmatpush1.msra.mxu0 %v169
    %188 = vmatprep.subr.mxu0 0.0
    %189 = vmatpush1.msra.mxu0 %v170
    %190 = vmatprep.subr.mxu0 0.0
    %191 = vmatpush1.msra.mxu0 %v171
    %192 = vmatprep.subr.mxu0 0.0
    %193 = vmatpush1.msra.mxu0 %v172
    %194 = vmatprep.subr.mxu0 0.0
    %195 = vmatpush1.msra.mxu0 %v173
    %196 = vmatprep.subr.mxu0 0.0
    %197 = vmatpush1.msra.mxu0 %v174
    %198 = vmatprep.subr.mxu0 0.0
    %199 = vmatpush1.msra.mxu0 %v175
    %200 = vmatprep.subr.mxu0 0.0
    %201 = vmatpush1.msra.mxu0 %v176
    %202 = vmatprep.subr.mxu0 0.0
    %203 = vmatpush1.msra.mxu0 %v177
    %204 = vmatprep.subr.mxu0 0.0
    %205 = vmatpush1.msra.mxu0 %v178
    %206 = vmatprep.subr.mxu0 0.0
    %207 = vmatpush1.msra.mxu0 %v179
    %208 = vmatprep.subr.mxu0 0.0
    %209 = vmatpush1.msra.mxu0 %v180
    %210 = vmatprep.subr.mxu0 0.0
    %211 = vmatpush1.msra.mxu0 %v181
    %212 = vmatprep.subr.mxu0 0.0
    %213 = vmatpush1.msra.mxu0 %v182
    %214 = vmatprep.subr.mxu0 0.0
    %215 = vmatpush1.msra.mxu0 %v183
    %216 = vmatprep.subr.mxu0 0.0
    %217 = vmatpush1.msra.mxu0 0.0
    %218 = vmatprep.subr.mxu0 0.0
    %219 = vmatpush1.msra.mxu0 0.0
    %220 = vmatprep.subr.mxu0 0.0
    %221 = vmatpush1.msra.mxu0 0.0
    %222 = vmatprep.subr.mxu0 0.0
    %223 = vmatpush1.msra.mxu0 0.0
    %224 = vmatprep.subr.mxu0 0.0
    %225 = vmatpush1.msra.mxu0 0.0
    %226 = vmatprep.subr.mxu0 0.0
    %227 = vmatpush1.msra.mxu0 0.0
    %228 = vmatprep.subr.mxu0 0.0
    %229 = vmatpush1.msra.mxu0 0.0
    %230 = vmatprep.subr.mxu0 0.0
    %231 = vmatpush1.msra.mxu0 0.0
    %232 = vmatprep.subr.mxu0 0.0
    %233 = vmatpush1.msra.mxu0 0.0
    %234 = vmatprep.subr.mxu0 0.0
    %235 = vmatpush1.msra.mxu0 0.0
    %236 = vmatprep.subr.mxu0 0.0
    %237 = vmatpush1.msra.mxu0 0.0
    %238 = vmatprep.subr.mxu0 0.0
    %239 = vmatpush1.msra.mxu0 0.0
    %240 = vmatprep.subr.mxu0 0.0
    %241 = vmatpush1.msra.mxu0 0.0
    %242 = vmatprep.subr.mxu0 0.0
    %243 = vmatpush1.msra.mxu0 0.0
    %244 = vmatprep.subr.mxu0 0.0
    %245 = vmatpush1.msra.mxu0 0.0
    %246 = vmatprep.subr.mxu0 0.0
    %247 = vmatpush1.msra.mxu0 0.0
    %248 = vmatprep.mubr.f32.mxu0 0.0
    %249 = vmatmul.mubr.f32.gmra.mrb[0].mxu0 %v167
    %v250 = vpop.f32.mrb[0].mxu0
    %v251 = vadd.f32 0.0, %v250
    %v252 = vpop.f32.mrb[0].mxu0
    %253 = vdwg.mxu0
    %v254 = vadd.f32 %v159, %v251
    %v255 = vld [vmem:[%s3 + $0x1] sm:$0x1]
    %v256 = vlaneseq
    %v257 = vshrl.u32 %v256, 7
    %v258 = vsub.s32 0, %v257
    %v259 = vrot.slane %v255, %v258
    %v260 = vadd.f32 %v254, %v259
    %261 = vst [vmem:[#allocation8] sm:$0xff] %v260
    // Predicated region
    $region30: #{tpu_custom_call.1} parent=1 // pred_check
      _
    $region31: #{tpu_custom_call.1} parent=1 // pred_check_branch
      %263 = sbr.rel (0) target = $region33
    $region32: #{tpu_custom_call.1} parent=1 // pred_region
      %s265 = ssub.s32 128, 128
      %266 = vsyncadd [#allocation4], %s265
      %s268 = sshll.u32 [#allocation8], 4
      %s269 = int_to_ptr.vmem [resolvable:$true] %s268
      %271 = dma.vmem_to_hbm [thread:$0]  %s269, 128, %s4, [#allocation4]
    $region33: #{tpu_custom_call.1} parent=1 // pred_fallthru
      _
    // Predicated region
    $region34: #{tpu_custom_call.1} parent=1 // pred_check
      _
    $region35: #{tpu_custom_call.1} parent=1 // pred_check_branch
      %273 = sbr.rel (0) target = $region37
    $region36: #{tpu_custom_call.1} parent=1 // pred_region
      %274 = dma.done [#allocation4], 128
    $region37: #{tpu_custom_call.1} parent=1 // pred_fallthru
      _
    %275 = vsyncpa [#allocation3], 1
    %276 = vsyncpa [#allocation6], 1
    %277 = vsyncpa [#allocation4], 1

</llo_original>
